<compile_context>
chip_gen: v7x
topology: tpu7x:2x2x1
jax: 0.10.0
libtpu: 0.0.40
codegen_flags: <defaults>
</compile_context>

<pallas_src>
import math

import jax
import jax.numpy as jnp
from jax.experimental import pallas as pl
from jax.experimental.pallas import tpu as pltpu

_LOG_2PI = math.log(2.0 * math.pi)
_LANES = 128
_SUB = 8          # f32 sublane count; output accumulator tile is (8, 128)
_ROW_ALIGN = 16   # tm multiple of 16 -> valid for both f32 and bf16 packing


def _cdiv(a: int, b: int) -> int:
    return -(-a // b)


def _round_up(a: int, b: int) -> int:
    return _cdiv(a, b) * b


def _is_v7x() -> bool:
    """True iff the default device is a TPU generation with 2 TensorCores/chip."""
    try:
        kind = jax.devices()[0].device_kind.lower()
    except Exception:
        return False
    return ("v7" in kind) or ("7x" in kind)


def _nll_loss_gaussian_ref(mean_pred, var_pred, target):
    """Plain-JAX reference (also used as the small-input fallback path)."""
    var_s = jnp.maximum(var_pred.astype(jnp.float32), jnp.float32(1e-6))
    diff = target.astype(jnp.float32) - mean_pred.astype(jnp.float32)
    loss = 0.5 * (jnp.log(var_s) + diff * diff / var_s + _LOG_2PI)
    return loss.mean()


def nll_loss_gaussian(mean_pred: jax.Array, var_pred: jax.Array,
                      target: jax.Array, *,
                      block_rows: int | None = None,
                      min_pallas_elems: int = 128 * 1024) -> jax.Array:
    assert mean_pred.shape == var_pred.shape == target.shape
    n_elems = int(mean_pred.size)
    assert n_elems > 0

    # Small-input fallback: pallas_call launch & grid setup dominate; fused
    # XLA is faster and needs no layout plumbing at all.
    if n_elems < max(min_pallas_elems, _SUB * _LANES):
        return _nll_loss_gaussian_ref(mean_pred, var_pred, target)

    if block_rows is None:
        # v7x: 3.2 TB/s HBM makes the per-step overhead the biggest relative
        # tax; 4096 rows (12 MiB double-buffered) stays far under its 64 MiB
        # VMEM.  v5e/v6e: 2048 rows (6 MiB) fits the 16/32 MiB scoped default.
        block_rows = 4096 if _is_v7x() else 2048
    block_rows = max(_ROW_ALIGN, _round_up(block_rows, _ROW_ALIGN))

    # Flatten (free, metadata-only).  Keep native dtype: the kernel casts to
    # f32 in-register, so bf16 callers stream 6 B/elem instead of 12.
    mean_f = mean_pred.reshape(-1)
    var_f = var_pred.reshape(-1)
    tgt_f = target.reshape(-1)

    # Rare path: n_elems not a multiple of the 128-lane width.  Pad the flat
    # arrays by < 128 neutral elements (mean = target = 0, var = 1 adds
    # exactly 0 to the accumulated sum; the final mean divides by the true
    # n_elems).  Typical NN tensors never hit this branch.
    if n_elems % _LANES != 0:
        pad = _round_up(n_elems, _LANES) - n_elems
        mean_f = jnp.pad(mean_f, (0, pad))
        tgt_f = jnp.pad(tgt_f, (0, pad))
        var_f = jnp.pad(var_f, (0, pad), constant_values=1)

    rows = mean_f.shape[0] // _LANES          # fully-populated 128-wide rows
    m2 = mean_f.reshape(rows, _LANES)         # zero-copy reshapes
    v2 = var_f.reshape(rows, _LANES)
    t2 = tgt_f.reshape(rows, _LANES)

    # --- Tiling / core split, balanced by rows ------------------------------
    n_cores = 2 if (_is_v7x() and rows >= 2 * _ROW_ALIGN) else 1
    rows_per_core = _cdiv(rows, n_cores)
    blocks_per_core = _cdiv(rows_per_core, block_rows)
    tm = _round_up(_cdiv(rows_per_core, blocks_per_core), _ROW_ALIGN)
    if tm > rows:                             # tiny forced-Pallas inputs only
        tm = max(_SUB, (rows // _SUB) * _SUB)
        blocks_per_core = _cdiv(rows_per_core, tm)
    assert tm % _SUB == 0 and tm <= rows
    last_block = (rows - 1) // tm             # last block holding real data

    def kernel(mean_ref, var_ref, tgt_ref, out_ref):
        # Zero this core's partial-sum tile at the start of its sweep.
        @pl.when(pl.program_id(1) == 0)
        def _():
            out_ref[...] = jnp.zeros_like(out_ref)

        mean = mean_ref[...].astype(jnp.float32)
        var = var_ref[...].astype(jnp.float32)
        tgt = tgt_ref[...].astype(jnp.float32)

        var_s = jnp.maximum(var, jnp.float32(1e-6))
        diff = tgt - mean
        # Accumulate only log(var) + (t-m)^2/var; the 0.5 factor and
        # log(2*pi) are applied once in the wrapper.  Exact division kept
        # on purpose: HBM-bound, compute slots have 3-5x headroom.
        term = jnp.log(var_s) + (diff * diff) / var_s

        block_idx = pl.program_id(0) * blocks_per_core + pl.program_id(1)
        valid = rows - block_idx * tm         # rows of real data in this block

        @pl.when(valid >= tm)                 # full block: no masking cost
        def _():
            out_ref[...] += term.reshape(-1, _SUB, _LANES).sum(axis=0)

        @pl.when(valid < tm)                  # ragged tail: mask garbage rows
        def _():
            row_ids = jax.lax.broadcasted_iota(jnp.int32, (tm, _LANES), 0)
            masked = jnp.where(row_ids < valid, term, 0.0)
            out_ref[...] += masked.reshape(-1, _SUB, _LANES).sum(axis=0)

    # Blocks past the end of the data (possible only for a trailing core on an
    # imbalanced split) are clamped onto the last real block; their
    # contribution is masked to zero in-kernel, and every DMA window stays
    # fully in-bounds.
    def in_map(c, i):
        return (jnp.minimum(c * blocks_per_core + i, last_block), 0)

    in_spec = pl.BlockSpec((tm, _LANES), in_map)
    out_spec = pl.BlockSpec((None, _SUB, _LANES), lambda c, i: (c, 0, 0))

    partials = pl.pallas_call(
        kernel,
        out_shape=jax.ShapeDtypeStruct((n_cores, _SUB, _LANES), jnp.float32),
        grid_spec=pltpu.PrefetchScalarGridSpec(
            num_scalar_prefetch=0,
            grid=(n_cores, blocks_per_core),
            in_specs=[in_spec, in_spec, in_spec],
            out_specs=out_spec,
        ),
        compiler_params=pltpu.CompilerParams(
            dimension_semantics=("parallel", "arbitrary"),
            vmem_limit_bytes=32 * 1024 * 1024,
        ),
    )(m2, v2, t2)

    total = jnp.sum(partials)
    return 0.5 * (total / jnp.float32(n_elems) + jnp.float32(_LOG_2PI))


def _make_inputs(key, shape, dtype=jnp.float32):
    k1, k2, k3 = jax.random.split(key, 3)
    mean_pred = jax.random.normal(k1, shape, dtype=jnp.float32)
    var_pred = jax.nn.softplus(jax.random.normal(k2, shape, dtype=jnp.float32))
    target = jax.random.normal(k3, shape, dtype=jnp.float32)
    return (mean_pred.astype(dtype), var_pred.astype(dtype), target.astype(dtype))


if __name__ == "__main__":
    key = jax.random.PRNGKey(0)
    keys = jax.random.split(key, 4)

    # 1) Primary check: NCHW-style predictions [2, 4, 16, 16] (2048 elements,
    #    one 16x128 block).  Force the Pallas path past the small-input
    #    fallback so the kernel is actually exercised.
    m, v, t = _make_inputs(keys[0], (2, 4, 16, 16))
    loss = nll_loss_gaussian(m, v, t, min_pallas_elems=0)
    jax.block_until_ready(loss)
    ref = _nll_loss_gaussian_ref(m, v, t)
    assert jnp.allclose(loss, ref, rtol=1e-5, atol=1e-5), (loss, ref)

    # 2) Multi-block reduction + in-kernel ragged-row masking
    #    (3840 elems = 30 rows; two 16-row blocks, last block 14 valid rows).
    m, v, t = _make_inputs(keys[1], (3, 5, 256))
    loss = nll_loss_gaussian(m, v, t, block_rows=16, min_pallas_elems=0)
    jax.block_until_ready(loss)
    ref = _nll_loss_gaussian_ref(m, v, t)
    assert jnp.allclose(loss, ref, rtol=1e-5, atol=1e-5), (loss, ref)

    # 3) n_elems not a multiple of 128 -> rare neutral-pad path (5005 elems).
    m, v, t = _make_inputs(keys[2], (5, 13, 77))
    loss = nll_loss_gaussian(m, v, t, block_rows=16, min_pallas_elems=0)
    jax.block_until_ready(loss)
    ref = _nll_loss_gaussian_ref(m, v, t)
    assert jnp.allclose(loss, ref, rtol=1e-5, atol=1e-5), (loss, ref)

    # 4) bf16 inputs streamed natively (kernel casts to f32 in-register).
    m, v, t = _make_inputs(keys[3], (4, 4, 48, 48), dtype=jnp.bfloat16)
    loss = nll_loss_gaussian(m, v, t, min_pallas_elems=0)
    jax.block_until_ready(loss)
    ref = _nll_loss_gaussian_ref(m, v, t)
    assert jnp.allclose(loss, ref, rtol=1e-4, atol=1e-4), (loss, ref)

    # 5) Default small-input fallback path (plain fused XLA).
    m, v, t = _make_inputs(keys[0], (2, 4, 16, 16))
    loss = nll_loss_gaussian(m, v, t)
    jax.block_until_ready(loss)
    ref = _nll_loss_gaussian_ref(m, v, t)
    assert jnp.allclose(loss, ref, rtol=1e-5, atol=1e-5), (loss, ref)

    print("KERNEL_OK")
</pallas_src>

<mosaic_0001>
module attributes {stable_mosaic.version = 11 : i64} {
  func.func @kernel(%arg0: i32, %arg1: i32, %arg2: memref<16x128xf32, #tpu.memory_space<vmem>>, %arg3: memref<16x128xf32, #tpu.memory_space<vmem>>, %arg4: memref<16x128xf32, #tpu.memory_space<vmem>>, %arg5: memref<1x8x128xf32, #tpu.memory_space<vmem>>) attributes {dimension_semantics = [#tpu.dimension_semantics<parallel>, #tpu.dimension_semantics<arbitrary>], iteration_bounds = array<i64: 1, 1>, scalar_prefetch = 0 : i64, scratch_operands = 0 : i64, tpu.core_type = #tpu.core_type<tc>, window_params = [{transform_indices = @transform_0, window_bounds = array<i64: 16, 128>}, {transform_indices = @transform_1, window_bounds = array<i64: 16, 128>}, {transform_indices = @transform_2, window_bounds = array<i64: 16, 128>}, {transform_indices = @transform_3, window_bounds = array<i64: 1, 8, 128>}]} {
    %c0_i32 = arith.constant 0 : i32
    %0 = arith.cmpi eq, %arg1, %c0_i32 : i32
    %1 = arith.extui %0 : i1 to i32
    %c0_i32_0 = arith.constant 0 : i32
    %2 = arith.cmpi ne, %1, %c0_i32_0 : i32
    scf.if %2 {
      %cst_11 = arith.constant 0.000000e+00 : f32
      %23 = vector.broadcast %cst_11 : f32 to vector<8x128xf32>
      %c0_12 = arith.constant 0 : index
      %c0_13 = arith.constant 0 : index
      %c0_14 = arith.constant 0 : index
      %24 = vector.load %arg5[%c0_12, %c0_13, %c0_14] : memref<1x8x128xf32, #tpu.memory_space<vmem>>, vector<1x8x128xf32>
      %25 = vector.shape_cast %24 : vector<1x8x128xf32> to vector<8x128xf32>
      %26 = vector.shape_cast %23 : vector<8x128xf32> to vector<1x8x128xf32>
      tpu.vector_store %arg5[%c0_12, %c0_13, %c0_14], %26 {strides = array<i32>} : memref<1x8x128xf32, #tpu.memory_space<vmem>>, vector<1x8x128xf32>,
    } else {
    }
    %c0 = arith.constant 0 : index
    %c0_1 = arith.constant 0 : index
    %3 = vector.load %arg2[%c0, %c0_1] : memref<16x128xf32, #tpu.memory_space<vmem>>, vector<16x128xf32>
    %c0_2 = arith.constant 0 : index
    %c0_3 = arith.constant 0 : index
    %4 = vector.load %arg3[%c0_2, %c0_3] : memref<16x128xf32, #tpu.memory_space<vmem>>, vector<16x128xf32>
    %c0_4 = arith.constant 0 : index
    %c0_5 = arith.constant 0 : index
    %5 = vector.load %arg4[%c0_4, %c0_5] : memref<16x128xf32, #tpu.memory_space<vmem>>, vector<16x128xf32>
    %cst = arith.constant 9.99999997E-7 : f32
    %6 = vector.broadcast %cst : f32 to vector<16x128xf32>
    %7 = arith.maximumf %4, %6 : vector<16x128xf32>
    %8 = arith.subf %5, %3 : vector<16x128xf32>
    %9 = math.log %7 : vector<16x128xf32>
    %10 = arith.mulf %8, %8 : vector<16x128xf32>
    %11 = arith.divf %10, %7 : vector<16x128xf32>
    %12 = arith.addf %9, %11 : vector<16x128xf32>
    %c1_i32 = arith.constant 1 : i32
    %13 = arith.muli %arg0, %c1_i32 : i32
    %14 = arith.addi %13, %arg1 : i32
    %c16_i32 = arith.constant 16 : i32
    %15 = arith.muli %14, %c16_i32 : i32
    %c16_i32_6 = arith.constant 16 : i32
    %16 = arith.subi %c16_i32_6, %15 : i32
    %c16_i32_7 = arith.constant 16 : i32
    %17 = arith.cmpi sge, %16, %c16_i32_7 : i32
    %18 = arith.extui %17 : i1 to i32
    %c0_i32_8 = arith.constant 0 : i32
    %19 = arith.cmpi ne, %18, %c0_i32_8 : i32
    scf.if %19 {
      %c0_11 = arith.constant 0 : index
      %c0_12 = arith.constant 0 : index
      %c0_13 = arith.constant 0 : index
      %23 = vector.load %arg5[%c0_11, %c0_12, %c0_13] : memref<1x8x128xf32, #tpu.memory_space<vmem>>, vector<1x8x128xf32>
      %24 = vector.shape_cast %23 : vector<1x8x128xf32> to vector<8x128xf32>
      %25 = vector.shape_cast %12 : vector<16x128xf32> to vector<2x8x128xf32>
      %cst_14 = arith.constant dense<0.000000e+00> : vector<8x128xf32>
      %26 = vector.multi_reduction <add>, %25, %cst_14 [0] : vector<2x8x128xf32> to vector<8x128xf32>
      %27 = arith.addf %24, %26 : vector<8x128xf32>
      %c0_15 = arith.constant 0 : index
      %c0_16 = arith.constant 0 : index
      %c0_17 = arith.constant 0 : index
      %28 = vector.load %arg5[%c0_15, %c0_16, %c0_17] : memref<1x8x128xf32, #tpu.memory_space<vmem>>, vector<1x8x128xf32>
      %29 = vector.shape_cast %28 : vector<1x8x128xf32> to vector<8x128xf32>
      %30 = vector.shape_cast %27 : vector<8x128xf32> to vector<1x8x128xf32>
      tpu.vector_store %arg5[%c0_15, %c0_16, %c0_17], %30 {strides = array<i32>} : memref<1x8x128xf32, #tpu.memory_space<vmem>>, vector<1x8x128xf32>,
    } else {
    }
    %c16_i32_9 = arith.constant 16 : i32
    %20 = arith.cmpi slt, %16, %c16_i32_9 : i32
    %21 = arith.extui %20 : i1 to i32
    %c0_i32_10 = arith.constant 0 : i32
    %22 = arith.cmpi ne, %21, %c0_i32_10 : i32
    scf.if %22 {
      %23 = tpu.iota {dimensions = array<i32: 0>} : vector<16x128xi32>
      %24 = vector.broadcast %16 : i32 to vector<16x128xi32>
      %25 = arith.cmpi slt, %23, %24 : vector<16x128xi32>
      %cst_11 = arith.constant 0.000000e+00 : f32
      %26 = vector.broadcast %cst_11 : f32 to vector<16x128xf32>
      %27 = arith.select %25, %12, %26 : vector<16x128xi1>, vector<16x128xf32>
      %c0_12 = arith.constant 0 : index
      %c0_13 = arith.constant 0 : index
      %c0_14 = arith.constant 0 : index
      %28 = vector.load %arg5[%c0_12, %c0_13, %c0_14] : memref<1x8x128xf32, #tpu.memory_space<vmem>>, vector<1x8x128xf32>
      %29 = vector.shape_cast %28 : vector<1x8x128xf32> to vector<8x128xf32>
      %30 = vector.shape_cast %27 : vector<16x128xf32> to vector<2x8x128xf32>
      %cst_15 = arith.constant dense<0.000000e+00> : vector<8x128xf32>
      %31 = vector.multi_reduction <add>, %30, %cst_15 [0] : vector<2x8x128xf32> to vector<8x128xf32>
      %32 = arith.addf %29, %31 : vector<8x128xf32>
      %c0_16 = arith.constant 0 : index
      %c0_17 = arith.constant 0 : index
      %c0_18 = arith.constant 0 : index
      %33 = vector.load %arg5[%c0_16, %c0_17, %c0_18] : memref<1x8x128xf32, #tpu.memory_space<vmem>>, vector<1x8x128xf32>
      %34 = vector.shape_cast %33 : vector<1x8x128xf32> to vector<8x128xf32>
      %35 = vector.shape_cast %32 : vector<8x128xf32> to vector<1x8x128xf32>
      tpu.vector_store %arg5[%c0_16, %c0_17, %c0_18], %35 {strides = array<i32>} : memref<1x8x128xf32, #tpu.memory_space<vmem>>, vector<1x8x128xf32>,
    } else {
    }
    return
  }
  func.func @transform_0(%arg0: i32, %arg1: i32) -> (i32, i32) {
    %c1_i32 = arith.constant 1 : i32
    %0 = arith.muli %arg0, %c1_i32 : i32
    %1 = arith.addi %0, %arg1 : i32
    %c0_i32 = arith.constant 0 : i32
    %2 = arith.minsi %1, %c0_i32 : i32
    %c0_i32_0 = arith.constant 0 : i32
    %c0_i32_1 = arith.constant 0 : i32
    return %2, %c0_i32_0 : i32, i32
  }
  func.func @transform_1(%arg0: i32, %arg1: i32) -> (i32, i32) {
    %c1_i32 = arith.constant 1 : i32
    %0 = arith.muli %arg0, %c1_i32 : i32
    %1 = arith.addi %0, %arg1 : i32
    %c0_i32 = arith.constant 0 : i32
    %2 = arith.minsi %1, %c0_i32 : i32
    %c0_i32_0 = arith.constant 0 : i32
    %c0_i32_1 = arith.constant 0 : i32
    return %2, %c0_i32_0 : i32, i32
  }
  func.func @transform_2(%arg0: i32, %arg1: i32) -> (i32, i32) {
    %c1_i32 = arith.constant 1 : i32
    %0 = arith.muli %arg0, %c1_i32 : i32
    %1 = arith.addi %0, %arg1 : i32
    %c0_i32 = arith.constant 0 : i32
    %2 = arith.minsi %1, %c0_i32 : i32
    %c0_i32_0 = arith.constant 0 : i32
    %c0_i32_1 = arith.constant 0 : i32
    return %2, %c0_i32_0 : i32, i32
  }
  func.func @transform_3(%arg0: i32, %arg1: i32) -> (i32, i32, i32) {
    %c0_i32 = arith.constant 0 : i32
    %c0_i32_0 = arith.constant 0 : i32
    %c0_i32_1 = arith.constant 0 : i32
    return %arg0, %c0_i32, %c0_i32_0 : i32, i32, i32
  }
}

</mosaic_0001>

<llo_original>
// kernel: tpu_custom_call.1
$region0: #{tpu_custom_call.1}
  #allocation0 [shape = 'u32[]', space=smem, size = 0x4, offset = 0x4, fixed_abs, tag = 'smem constant byte address 0x4 - core index']
  #allocation1 [shape = 'u32[144,128]{1,0:T(1,128)}', space=vmem, size = 0x12000, scoped, tag = 'internal scratch']
  %s0 = inlined_call_operand.hbm [shape: f32[16,128], index: 0, kind: input, shape index: {}]
  %s1 = inlined_call_operand.hbm [shape: f32[16,128], index: 1, kind: input, shape index: {}]
  %s2 = inlined_call_operand.hbm [shape: f32[16,128], index: 2, kind: input, shape index: {}]
  %s3 = inlined_call_operand.hbm [shape: f32[1,8,128], index: 3, kind: output, shape index: {}]
  %s4 = sld [smem:[#allocation0]]
  $region46: #{tpu_custom_call.1} parent=0
    _
  %s6 = ssub.s32 1, %s4
  %s7 = scalar_select 0, %s6, %s4
  $region1: #{tpu_custom_call.1} parent=0
    #allocation2 [shape = 'u8[8192]{0}', space=vmem, size = 0x2000, scoped, tag = 'input window, operand 0, single buffered']
    #allocation3 [shape = 's32[1]{0}', space=sflag, size = 0x4, scoped, tag = 'scoped memory for tpu_custom_call.1']
    #allocation4 [shape = 's32[1]{0}', space=sflag, size = 0x4, scoped, tag = 'scoped memory for tpu_custom_call.1']
    #allocation5 [shape = 'u8[8192]{0}', space=vmem, size = 0x2000, scoped, tag = 'input window, operand 1, single buffered']
    #allocation6 [shape = 's32[1]{0}', space=sflag, size = 0x4, scoped, tag = 'scoped memory for tpu_custom_call.1']
    #allocation7 [shape = 'u8[8192]{0}', space=vmem, size = 0x2000, scoped, tag = 'input window, operand 2, single buffered']
    #allocation8 [shape = 'u8[4096]{0}', space=vmem, size = 0x1000, scoped, tag = 'output window, operand 0, single buffered']
    %8 = vsyncpa [#allocation3], 0
    %9 = vsyncpa [#allocation6], 0
    %10 = vsyncpa [#allocation4], 0
    // Predicated region
    $region2: #{tpu_custom_call.1} parent=1 // pred_check
      _
    $region3: #{tpu_custom_call.1} parent=1 // pred_check_branch
      %12 = sbr.rel (0) target = $region5
    $region4: #{tpu_custom_call.1} parent=1 // pred_region
      %s13 = sadd.s32 0, 0
      %p14 = scmp.lt.s32.totalorder %s13, 0
      %s15 = scalar_select %p14, %s13, 0
      %s16 = smul.u32 2, %s15
      %s18 = ssub.s32 256, 256
      %19 = vsyncadd [#allocation3], %s18
      %s20 = smul.addr %s16, 128
      %s21 = scalar_lea.hbm %s0, %s20
      %s22 = sshll.u32 [#allocation2], 4
      %s23 = int_to_ptr.vmem [resolvable:$true] %s22
      %28 = dma.hbm_to_vmem [thread:$0]  %s21, 256, %s23, [#allocation3], 128, 128, 8
    $region5: #{tpu_custom_call.1} parent=1 // pred_fallthru
      _
    // Predicated region
    $region6: #{tpu_custom_call.1} parent=1 // pred_check
      _
    $region7: #{tpu_custom_call.1} parent=1 // pred_check_branch
      %30 = sbr.rel (0) target = $region9
    $region8: #{tpu_custom_call.1} parent=1 // pred_region
      %s31 = sadd.s32 0, 0
      %p32 = scmp.lt.s32.totalorder %s31, 0
      %s33 = scalar_select %p32, %s31, 0
      %s34 = smul.u32 2, %s33
      %s36 = ssub.s32 256, 256
      %37 = vsyncadd [#allocation6], %s36
      %s38 = smul.addr %s34, 128
      %s39 = scalar_lea.hbm %s1, %s38
      %s40 = sshll.u32 [#allocation5], 4
      %s41 = int_to_ptr.vmem [resolvable:$true] %s40
      %46 = dma.hbm_to_vmem [thread:$0]  %s39, 256, %s41, [#allocation6], 128, 128, 8
    $region9: #{tpu_custom_call.1} parent=1 // pred_fallthru
      _
    // Predicated region
    $region10: #{tpu_custom_call.1} parent=1 // pred_check
      _
    $region11: #{tpu_custom_call.1} parent=1 // pred_check_branch
      %48 = sbr.rel (0) target = $region13
    $region12: #{tpu_custom_call.1} parent=1 // pred_region
      %s49 = sadd.s32 0, 0
      %p50 = scmp.lt.s32.totalorder %s49, 0
      %s51 = scalar_select %p50, %s49, 0
      %s52 = smul.u32 2, %s51
      %s54 = ssub.s32 256, 256
      %55 = vsyncadd [#allocation6], %s54
      %s56 = smul.addr %s52, 128
      %s57 = scalar_lea.hbm %s2, %s56
      %s58 = sshll.u32 [#allocation7], 4
      %s59 = int_to_ptr.vmem [resolvable:$true] %s58
      %64 = dma.hbm_to_vmem [thread:$0]  %s57, 256, %s59, [#allocation6], 128, 128, 8
    $region13: #{tpu_custom_call.1} parent=1 // pred_fallthru
      _
    // Predicated region
    $region14: #{tpu_custom_call.1} parent=1 // pred_check
      _
    $region15: #{tpu_custom_call.1} parent=1 // pred_check_branch
      %66 = sbr.rel (0) target = $region17
    $region16: #{tpu_custom_call.1} parent=1 // pred_region
      %67 = dma.done [#allocation3], 256
    $region17: #{tpu_custom_call.1} parent=1 // pred_fallthru
      _
    // Predicated region
    $region18: #{tpu_custom_call.1} parent=1 // pred_check
      _
    $region19: #{tpu_custom_call.1} parent=1 // pred_check_branch
      %69 = sbr.rel (0) target = $region21
    $region20: #{tpu_custom_call.1} parent=1 // pred_region
      %70 = dma.done [#allocation6], 256
    $region21: #{tpu_custom_call.1} parent=1 // pred_fallthru
      _
    // Predicated region
    $region22: #{tpu_custom_call.1} parent=1 // pred_check
      _
    $region23: #{tpu_custom_call.1} parent=1 // pred_check_branch
      %72 = sbr.rel (0) target = $region25
    $region24: #{tpu_custom_call.1} parent=1 // pred_region
      %73 = dma.done [#allocation6], 256
    $region25: #{tpu_custom_call.1} parent=1 // pred_fallthru
      _
    %s74 = sadd.s32 0, 0
    %p75 = scmp.lt.s32.totalorder %s74, 0
    %s76 = scalar_select %p75, %s74, 0
    %s77 = smul.u32 2, %s76
    %s78 = sadd.s32 0, 0
    %p79 = scmp.lt.s32.totalorder %s78, 0
    %s80 = scalar_select %p79, %s78, 0
    %s81 = smul.u32 2, %s80
    %s82 = sadd.s32 0, 0
    %p83 = scmp.lt.s32.totalorder %s82, 0
    %s84 = scalar_select %p83, %s82, 0
    %s85 = smul.u32 2, %s84
    %p86 = scmp.eq.s32.totalorder 0, 0
    // Predicated region
    $region26: #{tpu_custom_call.1} parent=1 // pred_check
      %p87 = pneg %p86
    $region27: #{tpu_custom_call.1} parent=1 // pred_check_branch
      %89 = sbr.rel (%p87) target = $region29
    $region28: #{tpu_custom_call.1} parent=1 // pred_region
      %90 = vst [vmem:[#allocation8] sm:$0xff] 0.0
    $region29: #{tpu_custom_call.1} parent=1 // pred_fallthru
      _
    %v91 = vld [vmem:[#allocation2] sm:$0xff]
    %v92 = vld [vmem:[#allocation2 + $0x8] sm:$0xff]
    %v93 = vld [vmem:[#allocation5] sm:$0xff]
    %v94 = vld [vmem:[#allocation5 + $0x8] sm:$0xff]
    %v95 = vld [vmem:[#allocation7] sm:$0xff]
    %v96 = vld [vmem:[#allocation7 + $0x8] sm:$0xff]
    %v97 = vmax.f32 %v93, 1e-06
    %v98 = vmax.f32 %v94, 1e-06
    %v99 = vsub.f32 %v95, %v91
    %v100 = vsub.f32 %v96, %v92
    %v101 = vlog2.pop %v97
    %v102 = vmul.f32 %v101, 0.6931472
    %v103 = vlog2.pop %v98
    %v104 = vmul.f32 %v103, 0.6931472
    %v105 = vmul.f32 %v99, %v99
    %v106 = vmul.f32 %v100, %v100
    %v107 = vrcp.pop %v97
    %v108 = vmul.f32 %v105, %v107
    %v109 = vrcp.pop %v98
    %v110 = vmul.f32 %v106, %v109
    %v111 = vadd.f32 %v102, %v108
    %v112 = vadd.f32 %v104, %v110
    %s113 = sadd.s32 0, 0
    %s114 = smul.u32 %s113, 16
    %s115 = ssub.s32 16, %s114
    %p116 = scmp.ge.s32.totalorder %s115, 16
    // Predicated region
    $region30: #{tpu_custom_call.1} parent=1 // pred_check
      %p117 = pneg %p116
    $region31: #{tpu_custom_call.1} parent=1 // pred_check_branch
      %119 = sbr.rel (%p117) target = $region33
    $region32: #{tpu_custom_call.1} parent=1 // pred_region
      %v120 = vld [vmem:[#allocation8] sm:$0xff]
      %v121 = vadd.f32 %v111, %v112
      %v122 = vadd.f32 %v120, %v121
      %123 = vst [vmem:[#allocation8] sm:$0xff] %v122
    $region33: #{tpu_custom_call.1} parent=1 // pred_fallthru
      _
    %p124 = scmp.lt.s32.totalorder %s115, 16
    // Predicated region
    $region34: #{tpu_custom_call.1} parent=1 // pred_check
      %p125 = pneg %p124
    $region35: #{tpu_custom_call.1} parent=1 // pred_check_branch
      %127 = sbr.rel (%p125) target = $region37
    $region36: #{tpu_custom_call.1} parent=1 // pred_region
      %v128 = vlaneseq
      %v129 = vshrl.u32 %v128, 7
      %v130 = vadd.s32 %v129, 8
      %v131 = vstv %s115
      %vm132 = vcmp.lt.s32.totalorder %v129, %v131
      %vm133 = vcmp.lt.s32.totalorder %v130, %v131
      %v134 = vsel %vm132, %v111, 0.0
      %v135 = vsel %vm133, %v112, 0.0
      %v136 = vld [vmem:[#allocation8] sm:$0xff]
      %v137 = vadd.f32 %v134, %v135
      %v138 = vadd.f32 %v136, %v137
      %139 = vst [vmem:[#allocation8] sm:$0xff] %v138
    $region37: #{tpu_custom_call.1} parent=1 // pred_fallthru
      _
    // Predicated region
    $region38: #{tpu_custom_call.1} parent=1 // pred_check
      _
    $region39: #{tpu_custom_call.1} parent=1 // pred_check_branch
      %141 = sbr.rel (0) target = $region41
    $region40: #{tpu_custom_call.1} parent=1 // pred_region
      %s143 = ssub.s32 128, 128
      %144 = vsyncadd [#allocation4], %s143
      %s146 = sshll.u32 [#allocation8], 4
      %s147 = int_to_ptr.vmem [resolvable:$true] %s146
      %149 = dma.vmem_to_hbm [thread:$0]  %s147, 128, %s3, [#allocation4]
    $region41: #{tpu_custom_call.1} parent=1 // pred_fallthru
      _
    // Predicated region
    $region42: #{tpu_custom_call.1} parent=1 // pred_check
      _
    $region43: #{tpu_custom_call.1} parent=1 // pred_check_branch
      %151 = sbr.rel (0) target = $region45
    $region44: #{tpu_custom_call.1} parent=1 // pred_region
      %152 = dma.done [#allocation4], 128
    $region45: #{tpu_custom_call.1} parent=1 // pred_fallthru
      _
    %153 = vsyncpa [#allocation3], 1
    %154 = vsyncpa [#allocation6], 1
    %155 = vsyncpa [#allocation4], 1

</llo_original>
